<compile_context>
chip_gen: v6e
topology: v6e:2x2x1
jax: 0.10.0
libtpu: 0.0.40
codegen_flags: <defaults>
</compile_context>

<pallas_src>
import jax
import jax.numpy as jnp
from jax.experimental import pallas as pl
from jax.experimental.pallas import tpu as pltpu

IN_FEATURES = 9
OUT_FEATURES = 1
_MIN_PALLAS_ROWS = 128  # below this, launch overhead dominates -> plain XLA


def _round_up(x, m):
    return ((x + m - 1) // m) * m


def snc_kernel(x_ref, w_ref, b_ref, o_ref):
    # x_ref: [TM, 9] VMEM tile of the input batch
    # w_ref: [1, 9]  VMEM, resident across grid steps (constant index_map)
    # b_ref: [1]     SMEM scalar bias
    # o_ref: [TM, 1] VMEM output tile
    x = x_ref[...]                                   # [TM, 9]
    w = w_ref[...]                                   # [1, 9] broadcasts over rows
    b = b_ref[0]                                     # scalar from SMEM
    # VPU multiply + XLU lane-reduce; MXU left untouched.
    y = jnp.sum(x * w, axis=-1, keepdims=True)       # [TM, 1] f32
    o_ref[...] = (y + b).astype(o_ref.dtype)


def snc_forward(I, weight, bias, *, block_rows=2048):
    """Forward pass of SNC: O = I @ weight.T + bias.

    I:      [N, 9]  float32 (PyTorch nn.Linear input convention)
    weight: [1, 9]  float32 (PyTorch nn.Linear weight layout, NOT transposed)
    bias:   [1]     float32
    returns [N, 1]  float32
    """
    N, K = I.shape
    assert K == IN_FEATURES
    assert weight.shape == (OUT_FEATURES, IN_FEATURES)
    assert bias.shape == (OUT_FEATURES,)

    # Tiny batches: a pallas_call launch + one grid step (~0.35us) plus the
    # HBM round trip dwarfs the ~100ns of VPU work; let XLA handle it.
    if N < _MIN_PALLAS_ROWS:
        return (I @ weight.T + bias).astype(jnp.float32)

    # Batch tile: multiple of 8 sublanes; clamp to (padded) N.
    tm = min(_round_up(block_rows, 8), _round_up(N, 8))
    grid = (pl.cdiv(N, tm),)

    cost = pl.CostEstimate(
        flops=2 * N * K,
        transcendentals=0,
        bytes_accessed=N * K * 4 + N * 4 + K * 4 + 4,
    )

    return pl.pallas_call(
        snc_kernel,
        out_shape=jax.ShapeDtypeStruct((N, OUT_FEATURES), jnp.float32),
        grid_spec=pltpu.PrefetchScalarGridSpec(
            num_scalar_prefetch=0,
            grid=grid,
            in_specs=[
                # Input: tiled along batch -> double-buffered, pipelined DMA.
                pl.BlockSpec((tm, K), lambda i: (i, 0)),
                # Weight: tiny, constant index_map keeps it VMEM-resident.
                pl.BlockSpec((OUT_FEATURES, K), lambda i: (0, 0)),
                # Bias: scalar in SMEM (no VMEM vreg / extra input stream).
                pl.BlockSpec(memory_space=pltpu.MemorySpace.SMEM),
            ],
            out_specs=pl.BlockSpec((tm, OUT_FEATURES), lambda i: (i, 0)),
        ),
        compiler_params=pltpu.CompilerParams(
            # Independent batch tiles: "parallel" lets v7x's two TensorCores
            # split the grid; harmless on v5e/v6e.
            dimension_semantics=("parallel",),
            vmem_limit_bytes=32 * 1024 * 1024,
        ),
        cost_estimate=cost,
    )(I, weight, bias)


if __name__ == "__main__":
    key = jax.random.PRNGKey(0)
    k_x, k_w, k_b, k_x2 = jax.random.split(key, 4)

    # Deterministic parameter init mirroring nn.Linear(9, 1) defaults
    # (uniform in [-1/sqrt(in_features), 1/sqrt(in_features)]).
    bound = 1.0 / jnp.sqrt(jnp.float32(IN_FEATURES))
    weight = jax.random.uniform(
        k_w, (OUT_FEATURES, IN_FEATURES), jnp.float32, -bound, bound)
    bias = jax.random.uniform(k_b, (OUT_FEATURES,), jnp.float32, -bound, bound)

    # Batch large enough to exercise the tiled, pipelined Pallas path, with a
    # ragged final block (1000 = 3*256 + 232) to exercise partial-block
    # masking; block_rows kept small here only so the demo runs >1 grid step.
    N = 1000
    I = jax.random.normal(k_x, (N, IN_FEATURES), jnp.float32)

    out = snc_forward(I, weight, bias, block_rows=256)
    out = jax.block_until_ready(out)

    ref = I @ weight.T + bias
    assert out.shape == (N, OUT_FEATURES)
    assert jnp.allclose(out, ref, atol=1e-5, rtol=1e-5), float(
        jnp.max(jnp.abs(out - ref)))

    # Tiny-batch path (plain-XLA fallback; review item on dispatch).
    I_small = jax.random.normal(k_x2, (8, IN_FEATURES), jnp.float32)
    out_small = jax.block_until_ready(snc_forward(I_small, weight, bias))
    ref_small = I_small @ weight.T + bias
    assert out_small.shape == (8, OUT_FEATURES)
    assert jnp.allclose(out_small, ref_small, atol=1e-5, rtol=1e-5)

    print("KERNEL_OK")
</pallas_src>

<mosaic_0001>
module attributes {stable_mosaic.version = 11 : i64} {
  func.func @snc_kernel(%arg0: i32, %arg1: memref<256x9xf32, #tpu.memory_space<vmem>>, %arg2: memref<1x9xf32, #tpu.memory_space<vmem>>, %arg3: memref<1xf32, #tpu.memory_space<smem>>, %arg4: memref<256x1xf32, #tpu.memory_space<vmem>>) attributes {dimension_semantics = [#tpu.dimension_semantics<parallel>], iteration_bounds = array<i64: 4>, scalar_prefetch = 0 : i64, scratch_operands = 0 : i64, tpu.core_type = #tpu.core_type<tc>, window_params = [{transform_indices = @transform_0, window_bounds = array<i64: 256, 9>}, {pipeline_mode = #tpu.pipeline_mode<synchronous>, transform_indices = @transform_1, window_bounds = array<i64: 1, 9>}, {transform_indices = @transform_2, window_bounds = array<i64: 1>}, {transform_indices = @transform_3, window_bounds = array<i64: 256, 1>}]} {
    %c0 = arith.constant 0 : index
    %c0_0 = arith.constant 0 : index
    %0 = vector.load %arg1[%c0, %c0_0] : memref<256x9xf32, #tpu.memory_space<vmem>>, vector<256x9xf32>
    %c0_1 = arith.constant 0 : index
    %c0_2 = arith.constant 0 : index
    %1 = vector.load %arg2[%c0_1, %c0_2] : memref<1x9xf32, #tpu.memory_space<vmem>>, vector<1x9xf32>
    %c0_3 = arith.constant 0 : index
    %2 = memref.load %arg3[%c0_3] : memref<1xf32, #tpu.memory_space<smem>>
    %3 = vector.broadcast %1 : vector<1x9xf32> to vector<256x9xf32>
    %4 = arith.mulf %0, %3 : vector<256x9xf32>
    %cst = arith.constant dense<0.000000e+00> : vector<256xf32>
    %5 = vector.multi_reduction <add>, %4, %cst [1] : vector<256x9xf32> to vector<256xf32>
    %6 = vector.shape_cast %5 : vector<256xf32> to vector<256x1xf32>
    %7 = vector.broadcast %2 : f32 to vector<256x1xf32>
    %8 = arith.addf %6, %7 : vector<256x1xf32>
    %c0_4 = arith.constant 0 : index
    %c0_5 = arith.constant 0 : index
    %9 = vector.load %arg4[%c0_4, %c0_5] : memref<256x1xf32, #tpu.memory_space<vmem>>, vector<256x1xf32>
    tpu.vector_store %arg4[%c0_4, %c0_5], %8 {strides = array<i32>} : memref<256x1xf32, #tpu.memory_space<vmem>>, vector<256x1xf32>,
    return
  }
  func.func @transform_0(%arg0: i32) -> (i32, i32) {
    %c0_i32 = arith.constant 0 : i32
    %c0_i32_0 = arith.constant 0 : i32
    return %arg0, %c0_i32 : i32, i32
  }
  func.func @transform_1(%arg0: i32) -> (i32, i32) {
    %c0_i32 = arith.constant 0 : i32
    %c0_i32_0 = arith.constant 0 : i32
    %c0_i32_1 = arith.constant 0 : i32
    return %c0_i32, %c0_i32_0 : i32, i32
  }
  func.func @transform_2(%arg0: i32) -> i32 {
    %c0_i32 = arith.constant 0 : i32
    %c0_i32_0 = arith.constant 0 : i32
    return %c0_i32 : i32
  }
  func.func @transform_3(%arg0: i32) -> (i32, i32) {
    %c0_i32 = arith.constant 0 : i32
    %c0_i32_0 = arith.constant 0 : i32
    return %arg0, %c0_i32 : i32, i32
  }
}

</mosaic_0001>

<llo_original>
// kernel: tpu_custom_call.1
$region0: #{tpu_custom_call.1}
  #allocation0 [shape = 'u32[]', space=smem, size = 0x4, offset = 0x4, fixed_abs, tag = 'smem constant byte address 0x4 - core index']
  #allocation1 [shape = 'u32[144,128]{1,0:T(1,128)}', space=vmem, size = 0x12000, scoped, tag = 'internal scratch']
  #allocation2 [shape = 'f32[1]{0:T(128)S(6)}', space=smem, size = 0x200, scoped, tag = 'scoped memory for tpu_custom_call.1']
  %s0 = inlined_call_operand.vmem [shape: f32[1000,9], index: 0, kind: input, shape index: {}]
  %s1 = inlined_call_operand.vmem [shape: f32[1,9], index: 1, kind: input, shape index: {}]
  %s2 = inlined_call_operand.<no memory space> [shape: f32[1], index: 2, kind: input, shape index: {}]
  %s3 = inlined_call_operand.vmem [shape: f32[1000,1], index: 3, kind: output, shape index: {}]
  %s4 = sld [smem:[#allocation0]]
  $region93: #{tpu_custom_call.1} parent=0
    _
  %s6 = ssub.s32 1, %s4
  %s7 = scalar_select 0, %s6, %s4
  %8 = sst [smem:[#allocation2]] %s2
  $region1: #{tpu_custom_call.1} parent=0
    #allocation3 [shape = 'u8[262144]{0}', space=vmem, size = 0x40000, scoped, tag = 'output window, operand 0']
    loop: start=0, step=1, limit=6
    $region2: #{tpu_custom_call.1} parent=1 // loop_pre_header
      _
    $region3: #{tpu_custom_call.1} parent=1 // loop_header
      %s10 = sphi 0, %s14
      %p11 = scmp.ge.s32.totalorder %s10, 6
      %s20 = sphi 0, %s22
      %s23 = sphi 0, %s20
      %s24 = sphi 0, %s23
      %s40 = sphi 0, %s24
      %s44 = sphi 0, %s44
      %s46 = sphi 0, %s44
      %s47 = sphi 0, %s46
      %s61 = sphi 0, %s47
      %s65 = sphi 0, %s65
      %s67 = sphi 0, %s65
      %s68 = sphi 0, %s67
      %s82 = sphi 0, %s68
      %s88 = sphi 0, %s90
      %s91 = sphi 0, %s88
      %s92 = sphi 0, %s91
      %s108 = sphi 0, %s92
    $region4: #{tpu_custom_call.1} parent=1 // loop_header_branch
      %13 = sbr.rel (%p11) target = $region8
    $region5: #{tpu_custom_call.1} parent=1 // loop_body
      %s15 = ssub.s32 %s10, 1
      %s16 = ssub.s32 %s10, 2
      %s17 = sadd.s32 %s10, 1
      %s18 = ssub.s32 %s10, %s17
      %p19 = scmp.eq.s32.totalorder %s18, 0
      %s21 = sadd.s32 %s20, 1
      %s22 = scalar_select %p19, %s20, %s21
      %p25 = pneg %p19
      %p26 = scmp.eq.s32.totalorder %s10, 3
      %p27 = por %p25, %p26
      %p28 = scmp.ne.s32.totalorder %s20, %s23
      %p29 = scmp.eq.s32.totalorder %s10, 0
      %p30 = por %p28, %p29
      %p31 = scmp.ne.s32.totalorder %s20, %s23
      %p32 = scmp.eq.s32.totalorder %s15, 3
      %p33 = por %p31, %p32
      %p34 = scmp.ne.s32.totalorder %s23, %s24
      %p35 = scmp.eq.s32.totalorder %s15, 0
      %p36 = por %p34, %p35
      %p37 = scmp.ne.s32.totalorder %s23, %s24
      %p38 = scmp.eq.s32.totalorder %s16, 3
      %p39 = por %p37, %p38
      %p41 = scmp.ne.s32.totalorder %s24, %s40
      %p42 = scmp.eq.s32.totalorder %s16, 0
      %p43 = por %p41, %p42
      %s45 = sadd.s32 %s44, 1
      %p48 = scmp.eq.s32.totalorder %s10, 3
      %p49 = scmp.ne.s32.totalorder %s44, %s46
      %p50 = scmp.eq.s32.totalorder %s10, 0
      %p51 = por %p49, %p50
      %p52 = scmp.ne.s32.totalorder %s44, %s46
      %p53 = scmp.eq.s32.totalorder %s15, 3
      %p54 = por %p52, %p53
      %p55 = scmp.ne.s32.totalorder %s46, %s47
      %p56 = scmp.eq.s32.totalorder %s15, 0
      %p57 = por %p55, %p56
      %p58 = scmp.ne.s32.totalorder %s46, %s47
      %p59 = scmp.eq.s32.totalorder %s16, 3
      %p60 = por %p58, %p59
      %p62 = scmp.ne.s32.totalorder %s47, %s61
      %p63 = scmp.eq.s32.totalorder %s16, 0
      %p64 = por %p62, %p63
      %s66 = sadd.s32 %s65, 1
      %p69 = scmp.eq.s32.totalorder %s10, 3
      %p70 = scmp.ne.s32.totalorder %s65, %s67
      %p71 = scmp.eq.s32.totalorder %s10, 0
      %p72 = por %p70, %p71
      %p73 = scmp.ne.s32.totalorder %s65, %s67
      %p74 = scmp.eq.s32.totalorder %s15, 3
      %p75 = por %p73, %p74
      %p76 = scmp.ne.s32.totalorder %s67, %s68
      %p77 = scmp.eq.s32.totalorder %s15, 0
      %p78 = por %p76, %p77
      %p79 = scmp.ne.s32.totalorder %s67, %s68
      %p80 = scmp.eq.s32.totalorder %s16, 3
      %p81 = por %p79, %p80
      %p83 = scmp.ne.s32.totalorder %s68, %s82
      %p84 = scmp.eq.s32.totalorder %s16, 0
      %p85 = por %p83, %p84
      %s86 = ssub.s32 %s10, %s17
      %p87 = scmp.eq.s32.totalorder %s86, 0
      %s89 = sadd.s32 %s88, 1
      %s90 = scalar_select %p87, %s88, %s89
      %p93 = pneg %p87
      %p94 = scmp.eq.s32.totalorder %s10, 3
      %p95 = por %p93, %p94
      %p96 = scmp.ne.s32.totalorder %s88, %s91
      %p97 = scmp.eq.s32.totalorder %s10, 0
      %p98 = por %p96, %p97
      %p99 = scmp.ne.s32.totalorder %s88, %s91
      %p100 = scmp.eq.s32.totalorder %s15, 3
      %p101 = por %p99, %p100
      %p102 = scmp.ne.s32.totalorder %s91, %s92
      %p103 = scmp.eq.s32.totalorder %s15, 0
      %p104 = por %p102, %p103
      %p105 = scmp.ne.s32.totalorder %s91, %s92
      %p106 = scmp.eq.s32.totalorder %s16, 3
      %p107 = por %p105, %p106
      %p109 = scmp.ne.s32.totalorder %s92, %s108
      %p110 = scmp.eq.s32.totalorder %s16, 0
      %p111 = por %p109, %p110
      %p112 = scmp.le.s32.totalorder 1, %s10
      %p113 = scmp.lt.s32.totalorder %s10, 5
      %p114 = pnand %p112, %p113
      %p115 = pneg %p114
      // Predicated region
      $region9: #{tpu_custom_call.1} parent=5 // pred_check
        _
      $region10: #{tpu_custom_call.1} parent=5 // pred_check_branch
        %117 = sbr.rel (%p114) target = $region12
      $region11: #{tpu_custom_call.1} parent=5 // pred_region
        %s118 = ssub.s32 %s10, 1
        // Predicated region
        $region13: #{tpu_custom_call.1} parent=11 // pred_check
          %p119 = pneg %p57
        $region14: #{tpu_custom_call.1} parent=11 // pred_check_branch
          %121 = sbr.rel (%p119) target = $region16
        $region15: #{tpu_custom_call.1} parent=11 // pred_region
          _
        $region16: #{tpu_custom_call.1} parent=11 // pred_fallthru
          _
        // Predicated region
        $region17: #{tpu_custom_call.1} parent=11 // pred_check
          %p122 = pneg %p78
        $region18: #{tpu_custom_call.1} parent=11 // pred_check_branch
          %124 = sbr.rel (%p122) target = $region20
        $region19: #{tpu_custom_call.1} parent=11 // pred_region
          _
        $region20: #{tpu_custom_call.1} parent=11 // pred_fallthru
          _
      $region12: #{tpu_custom_call.1} parent=5 // pred_fallthru
        _
      %p125 = scmp.lt.s32.totalorder %s10, 4
      // Predicated region
      $region21: #{tpu_custom_call.1} parent=5 // pred_check
        %p126 = pneg %p125
      $region22: #{tpu_custom_call.1} parent=5 // pred_check_branch
        %128 = sbr.rel (%p126) target = $region24
      $region23: #{tpu_custom_call.1} parent=5 // pred_region
        // Predicated region
        $region25: #{tpu_custom_call.1} parent=23 // pred_check
          %p129 = pneg %p30
        $region26: #{tpu_custom_call.1} parent=23 // pred_check_branch
          %131 = sbr.rel (%p129) target = $region28
        $region27: #{tpu_custom_call.1} parent=23 // pred_region
          %s132 = smul.u32 32, %s10
          %s133 = ssub.s32 125, %s132
          %p134 = scmp.lt.s32.totalorder %s133, 32
          %s135 = scalar_select %p134, %s133, 32
          %s136 = smul.u32 128, %s135
          %p137 = scmp.lt.s32.totalorder %s132, 124
          %s138 = scalar_select %p137, %s132, 124
          %s139 = smul.addr %s138, 8
          %s140 = scalar_lea.vmem %s0, %s139
          %s141 = smul.u32 32, %s10
          %s142 = ssub.s32 125, %s141
          %p143 = scmp.lt.s32.totalorder %s142, 32
          %s144 = scalar_select %p143, %s142, 32
          %s145 = smul.u32 128, %s144
        $region28: #{tpu_custom_call.1} parent=23 // pred_fallthru
          _
      $region24: #{tpu_custom_call.1} parent=5 // pred_fallthru
        _
      %p146 = scmp.le.s32.totalorder 1, %s10
      %p147 = scmp.lt.s32.totalorder %s10, 5
      %p148 = pnand %p146, %p147
      %p149 = pneg %p148
      // Predicated region
      $region29: #{tpu_custom_call.1} parent=5 // pred_check
        _
      $region30: #{tpu_custom_call.1} parent=5 // pred_check_branch
        %151 = sbr.rel (%p148) target = $region32
      $region31: #{tpu_custom_call.1} parent=5 // pred_region
        %s152 = ssub.s32 %s10, 1
        %s153 = smul.u32 32, %s15
        %s154 = ssub.s32 125, %s153
        %p155 = scmp.lt.s32.totalorder %s154, 32
        %s156 = scalar_select %p155, %s154, 32
        %s157 = smul.u32 128, %s156
        %p158 = scmp.lt.s32.totalorder %s153, 124
        %s159 = scalar_select %p158, %s153, 124
        %s160 = smul.addr %s159, 8
        %s161 = scalar_lea.vmem %s0, %s160
        %p162 = pneg %p36
        %p163 = pneg %p33
        %p164 = pneg %p57
        %p165 = pneg %p54
        %p166 = pneg %p78
        %p167 = pneg %p75
        %p168 = pneg %p104
        %p169 = pneg %p101
        %s170 = sand.u32 %s91, 1
        %s171 = sand.u32 %s91, 1
        %s172 = smul.addr %s171, 256
        %s173 = scalar_lea.vmem [#allocation3], %s172
        %s174 = smul.u32 32, %s15
        %s175 = ssub.s32 125, %s174
        %p176 = scmp.lt.s32.totalorder %s175, 32
        %s177 = scalar_select %p176, %s175, 32
        %s178 = smul.u32 128, %s177
        %p179 = scmp.lt.s32.totalorder %s174, 124
        %s180 = scalar_select %p179, %s174, 124
        %s181 = smul.addr %s180, 8
        %s182 = scalar_lea.vmem %s0, %s181
        %s183 = smul.u32 32, %s15
        %s184 = ssub.s32 125, %s183
        %p185 = scmp.lt.s32.totalorder %s184, 32
        %s186 = scalar_select %p185, %s184, 32
        %s187 = smul.u32 128, %s186
        %s188 = smul.u32 32, %s15
        %s189 = ssub.s32 125, %s188
        %p190 = scmp.lt.s32.totalorder %s189, 32
        %s191 = scalar_select %p190, %s189, 32
        %s192 = smul.u32 128, %s191
        %v193 = vld [vmem:[%s182] sm:$0xff]
        %v194 = vld [vmem:[%s182 + $0x8] sm:$0xff]
        %v195 = vld [vmem:[%s182 + $0x10] sm:$0xff]
        %v196 = vld [vmem:[%s182 + $0x18] sm:$0xff]
        %v197 = vld [vmem:[%s182 + $0x20] sm:$0xff]
        %v198 = vld [vmem:[%s182 + $0x28] sm:$0xff]
        %v199 = vld [vmem:[%s182 + $0x30] sm:$0xff]
        %v200 = vld [vmem:[%s182 + $0x38] sm:$0xff]
        %v201 = vld [vmem:[%s182 + $0x40] sm:$0xff]
        %v202 = vld [vmem:[%s182 + $0x48] sm:$0xff]
        %v203 = vld [vmem:[%s182 + $0x50] sm:$0xff]
        %v204 = vld [vmem:[%s182 + $0x58] sm:$0xff]
        %v205 = vld [vmem:[%s182 + $0x60] sm:$0xff]
        %v206 = vld [vmem:[%s182 + $0x68] sm:$0xff]
        %v207 = vld [vmem:[%s182 + $0x70] sm:$0xff]
        %v208 = vld [vmem:[%s182 + $0x78] sm:$0xff]
        %v209 = vld [vmem:[%s182 + $0x80] sm:$0xff]
        %v210 = vld [vmem:[%s182 + $0x88] sm:$0xff]
        %v211 = vld [vmem:[%s182 + $0x90] sm:$0xff]
        %v212 = vld [vmem:[%s182 + $0x98] sm:$0xff]
        %v213 = vld [vmem:[%s182 + $0xa0] sm:$0xff]
        %v214 = vld [vmem:[%s182 + $0xa8] sm:$0xff]
        %v215 = vld [vmem:[%s182 + $0xb0] sm:$0xff]
        %v216 = vld [vmem:[%s182 + $0xb8] sm:$0xff]
        %v217 = vld [vmem:[%s182 + $0xc0] sm:$0xff]
        %v218 = vld [vmem:[%s182 + $0xc8] sm:$0xff]
        %v219 = vld [vmem:[%s182 + $0xd0] sm:$0xff]
        %v220 = vld [vmem:[%s182 + $0xd8] sm:$0xff]
        %v221 = vld [vmem:[%s182 + $0xe0] sm:$0xff]
        %v222 = vld [vmem:[%s182 + $0xe8] sm:$0xff]
        %v223 = vld [vmem:[%s182 + $0xf0] sm:$0xff]
        %v224 = vld [vmem:[%s182 + $0xf8] sm:$0xff]
        %v225 = vld [vmem:[%s1] sm:$0x1]
        %s226 = sld [smem:[#allocation2]]
        %v228 = vlaneseq
        %v229 = vshrl.u32 %v228, 7
        %v230 = vsub.s32 0, %v229
        %v231 = vrot.slane %v225, %v230
        %v233 = vmul.f32 %v193, %v231
        %v234 = vmul.f32 %v194, %v231
        %v235 = vmul.f32 %v195, %v231
        %v236 = vmul.f32 %v196, %v231
        %v237 = vmul.f32 %v197, %v231
        %v238 = vmul.f32 %v198, %v231
        %v239 = vmul.f32 %v199, %v231
        %v240 = vmul.f32 %v200, %v231
        %v241 = vmul.f32 %v201, %v231
        %v242 = vmul.f32 %v202, %v231
        %v243 = vmul.f32 %v203, %v231
        %v244 = vmul.f32 %v204, %v231
        %v245 = vmul.f32 %v205, %v231
        %v246 = vmul.f32 %v206, %v231
        %v247 = vmul.f32 %v207, %v231
        %v248 = vmul.f32 %v208, %v231
        %v249 = vmul.f32 %v209, %v231
        %v250 = vmul.f32 %v210, %v231
        %v251 = vmul.f32 %v211, %v231
        %v252 = vmul.f32 %v212, %v231
        %v253 = vmul.f32 %v213, %v231
        %v254 = vmul.f32 %v214, %v231
        %v255 = vmul.f32 %v215, %v231
        %v256 = vmul.f32 %v216, %v231
        %v257 = vmul.f32 %v217, %v231
        %v258 = vmul.f32 %v218, %v231
        %v259 = vmul.f32 %v219, %v231
        %v260 = vmul.f32 %v220, %v231
        %v261 = vmul.f32 %v221, %v231
        %v262 = vmul.f32 %v222, %v231
        %v263 = vmul.f32 %v223, %v231
        %v264 = vmul.f32 %v224, %v231
        %vm265 = vcmask 72704
        %v266 = vsel %vm265, %v233, 0.0
        %267 = vadd.xlane.f32.xlu0 %v266
        %v268 = vpop.xlane.xlu0 %267
        %v269 = vsel %vm265, %v234, 0.0
        %270 = vadd.xlane.f32.xlu0 %v269
        %v271 = vpop.xlane.xlu0 %270
        %v272 = vsel %vm265, %v235, 0.0
        %273 = vadd.xlane.f32.xlu0 %v272
        %v274 = vpop.xlane.xlu0 %273
        %v275 = vsel %vm265, %v236, 0.0
        %276 = vadd.xlane.f32.xlu0 %v275
        %v277 = vpop.xlane.xlu0 %276
        %v278 = vsel %vm265, %v237, 0.0
        %279 = vadd.xlane.f32.xlu0 %v278
        %v280 = vpop.xlane.xlu0 %279
        %v281 = vsel %vm265, %v238, 0.0
        %282 = vadd.xlane.f32.xlu0 %v281
        %v283 = vpop.xlane.xlu0 %282
        %v284 = vsel %vm265, %v239, 0.0
        %285 = vadd.xlane.f32.xlu0 %v284
        %v286 = vpop.xlane.xlu0 %285
        %v287 = vsel %vm265, %v240, 0.0
        %288 = vadd.xlane.f32.xlu0 %v287
        %v289 = vpop.xlane.xlu0 %288
        %v290 = vsel %vm265, %v241, 0.0
        %291 = vadd.xlane.f32.xlu0 %v290
        %v292 = vpop.xlane.xlu0 %291
        %v293 = vsel %vm265, %v242, 0.0
        %294 = vadd.xlane.f32.xlu0 %v293
        %v295 = vpop.xlane.xlu0 %294
        %v296 = vsel %vm265, %v243, 0.0
        %297 = vadd.xlane.f32.xlu0 %v296
        %v298 = vpop.xlane.xlu0 %297
        %v299 = vsel %vm265, %v244, 0.0
        %300 = vadd.xlane.f32.xlu0 %v299
        %v301 = vpop.xlane.xlu0 %300
        %v302 = vsel %vm265, %v245, 0.0
        %303 = vadd.xlane.f32.xlu0 %v302
        %v304 = vpop.xlane.xlu0 %303
        %v305 = vsel %vm265, %v246, 0.0
        %306 = vadd.xlane.f32.xlu0 %v305
        %v307 = vpop.xlane.xlu0 %306
        %v308 = vsel %vm265, %v247, 0.0
        %309 = vadd.xlane.f32.xlu0 %v308
        %v310 = vpop.xlane.xlu0 %309
        %v311 = vsel %vm265, %v248, 0.0
        %312 = vadd.xlane.f32.xlu0 %v311
        %v313 = vpop.xlane.xlu0 %312
        %v314 = vsel %vm265, %v249, 0.0
        %315 = vadd.xlane.f32.xlu0 %v314
        %v316 = vpop.xlane.xlu0 %315
        %v317 = vsel %vm265, %v250, 0.0
        %318 = vadd.xlane.f32.xlu0 %v317
        %v319 = vpop.xlane.xlu0 %318
        %v320 = vsel %vm265, %v251, 0.0
        %321 = vadd.xlane.f32.xlu0 %v320
        %v322 = vpop.xlane.xlu0 %321
        %v323 = vsel %vm265, %v252, 0.0
        %324 = vadd.xlane.f32.xlu0 %v323
        %v325 = vpop.xlane.xlu0 %324
        %v326 = vsel %vm265, %v253, 0.0
        %327 = vadd.xlane.f32.xlu0 %v326
        %v328 = vpop.xlane.xlu0 %327
        %v329 = vsel %vm265, %v254, 0.0
        %330 = vadd.xlane.f32.xlu0 %v329
        %v331 = vpop.xlane.xlu0 %330
        %v332 = vsel %vm265, %v255, 0.0
        %333 = vadd.xlane.f32.xlu0 %v332
        %v334 = vpop.xlane.xlu0 %333
        %v335 = vsel %vm265, %v256, 0.0
        %336 = vadd.xlane.f32.xlu0 %v335
        %v337 = vpop.xlane.xlu0 %336
        %v338 = vsel %vm265, %v257, 0.0
        %339 = vadd.xlane.f32.xlu0 %v338
        %v340 = vpop.xlane.xlu0 %339
        %v341 = vsel %vm265, %v258, 0.0
        %342 = vadd.xlane.f32.xlu0 %v341
        %v343 = vpop.xlane.xlu0 %342
        %v344 = vsel %vm265, %v259, 0.0
        %345 = vadd.xlane.f32.xlu0 %v344
        %v346 = vpop.xlane.xlu0 %345
        %v347 = vsel %vm265, %v260, 0.0
        %348 = vadd.xlane.f32.xlu0 %v347
        %v349 = vpop.xlane.xlu0 %348
        %v350 = vsel %vm265, %v261, 0.0
        %351 = vadd.xlane.f32.xlu0 %v350
        %v352 = vpop.xlane.xlu0 %351
        %v353 = vsel %vm265, %v262, 0.0
        %354 = vadd.xlane.f32.xlu0 %v353
        %v355 = vpop.xlane.xlu0 %354
        %v356 = vsel %vm265, %v263, 0.0
        %357 = vadd.xlane.f32.xlu0 %v356
        %v358 = vpop.xlane.xlu0 %357
        %v359 = vsel %vm265, %v264, 0.0
        %360 = vadd.xlane.f32.xlu0 %v359
        %v361 = vpop.xlane.xlu0 %360
        %v362 = vstv %s226
        %v363 = vadd.f32 %v268, %v362
        %v364 = vadd.f32 %v271, %v362
        %v365 = vadd.f32 %v274, %v362
        %v366 = vadd.f32 %v277, %v362
        %v367 = vadd.f32 %v280, %v362
        %v368 = vadd.f32 %v283, %v362
        %v369 = vadd.f32 %v286, %v362
        %v370 = vadd.f32 %v289, %v362
        %v371 = vadd.f32 %v292, %v362
        %v372 = vadd.f32 %v295, %v362
        %v373 = vadd.f32 %v298, %v362
        %v374 = vadd.f32 %v301, %v362
        %v375 = vadd.f32 %v304, %v362
        %v376 = vadd.f32 %v307, %v362
        %v377 = vadd.f32 %v310, %v362
        %v378 = vadd.f32 %v313, %v362
        %v379 = vadd.f32 %v316, %v362
        %v380 = vadd.f32 %v319, %v362
        %v381 = vadd.f32 %v322, %v362
        %v382 = vadd.f32 %v325, %v362
        %v383 = vadd.f32 %v328, %v362
        %v384 = vadd.f32 %v331, %v362
        %v385 = vadd.f32 %v334, %v362
        %v386 = vadd.f32 %v337, %v362
        %v387 = vadd.f32 %v340, %v362
        %v388 = vadd.f32 %v343, %v362
        %v389 = vadd.f32 %v346, %v362
        %v390 = vadd.f32 %v349, %v362
        %v391 = vadd.f32 %v352, %v362
        %v392 = vadd.f32 %v355, %v362
        %v393 = vadd.f32 %v358, %v362
        %v394 = vadd.f32 %v361, %v362
        %vm395 = vcmask 7168
        %396 = vst.msk [vmem:[%s173] sm:$0xff] %vm395, %v363
        %397 = vst.msk [vmem:[%s173 + $0x8] sm:$0xff] %vm395, %v364
        %398 = vst.msk [vmem:[%s173 + $0x10] sm:$0xff] %vm395, %v365
        %399 = vst.msk [vmem:[%s173 + $0x18] sm:$0xff] %vm395, %v366
        %400 = vst.msk [vmem:[%s173 + $0x20] sm:$0xff] %vm395, %v367
        %401 = vst.msk [vmem:[%s173 + $0x28] sm:$0xff] %vm395, %v368
        %402 = vst.msk [vmem:[%s173 + $0x30] sm:$0xff] %vm395, %v369
        %403 = vst.msk [vmem:[%s173 + $0x38] sm:$0xff] %vm395, %v370
        %404 = vst.msk [vmem:[%s173 + $0x40] sm:$0xff] %vm395, %v371
        %405 = vst.msk [vmem:[%s173 + $0x48] sm:$0xff] %vm395, %v372
        %406 = vst.msk [vmem:[%s173 + $0x50] sm:$0xff] %vm395, %v373
        %407 = vst.msk [vmem:[%s173 + $0x58] sm:$0xff] %vm395, %v374
        %408 = vst.msk [vmem:[%s173 + $0x60] sm:$0xff] %vm395, %v375
        %409 = vst.msk [vmem:[%s173 + $0x68] sm:$0xff] %vm395, %v376
        %410 = vst.msk [vmem:[%s173 + $0x70] sm:$0xff] %vm395, %v377
        %411 = vst.msk [vmem:[%s173 + $0x78] sm:$0xff] %vm395, %v378
        %412 = vst.msk [vmem:[%s173 + $0x80] sm:$0xff] %vm395, %v379
        %413 = vst.msk [vmem:[%s173 + $0x88] sm:$0xff] %vm395, %v380
        %414 = vst.msk [vmem:[%s173 + $0x90] sm:$0xff] %vm395, %v381
        %415 = vst.msk [vmem:[%s173 + $0x98] sm:$0xff] %vm395, %v382
        %416 = vst.msk [vmem:[%s173 + $0xa0] sm:$0xff] %vm395, %v383
        %417 = vst.msk [vmem:[%s173 + $0xa8] sm:$0xff] %vm395, %v384
        %418 = vst.msk [vmem:[%s173 + $0xb0] sm:$0xff] %vm395, %v385
        %419 = vst.msk [vmem:[%s173 + $0xb8] sm:$0xff] %vm395, %v386
        %420 = vst.msk [vmem:[%s173 + $0xc0] sm:$0xff] %vm395, %v387
        %421 = vst.msk [vmem:[%s173 + $0xc8] sm:$0xff] %vm395, %v388
        %422 = vst.msk [vmem:[%s173 + $0xd0] sm:$0xff] %vm395, %v389
        %423 = vst.msk [vmem:[%s173 + $0xd8] sm:$0xff] %vm395, %v390
        %424 = vst.msk [vmem:[%s173 + $0xe0] sm:$0xff] %vm395, %v391
        %425 = vst.msk [vmem:[%s173 + $0xe8] sm:$0xff] %vm395, %v392
        %426 = vst.msk [vmem:[%s173 + $0xf0] sm:$0xff] %vm395, %v393
        %427 = vst.msk [vmem:[%s173 + $0xf8] sm:$0xff] %vm395, %v394
        %s428 = sand.u32 %s91, 1
        %s429 = sand.u32 %s91, 1
        %s430 = smul.addr %s429, 256
        %s431 = scalar_lea.vmem [#allocation3], %s430
        // Predicated region
        $region33: #{tpu_custom_call.1} parent=31 // pred_check
          %p432 = pneg %p101
        $region34: #{tpu_custom_call.1} parent=31 // pred_check_branch
          %434 = sbr.rel (%p432) target = $region36
        $region35: #{tpu_custom_call.1} parent=31 // pred_region
          %s435 = smul.u32 32, %s15
          %s436 = ssub.s32 125, %s435
          %p437 = scmp.lt.s32.totalorder %s436, 32
          %s438 = scalar_select %p437, %s436, 32
          %s439 = smul.u32 128, %s438
          %p440 = scmp.ne.s32.totalorder 0, %s439
          %s441 = smul.addr %s435, 8
          %s442 = scalar_lea.vmem %s3, %s441
          // Predicated region
          $region37: #{tpu_custom_call.1} parent=35 // pred_check
            %p443 = pneg %p440
          $region38: #{tpu_custom_call.1} parent=35 // pred_check_branch
            %445 = sbr.rel (%p443) target = $region40
          $region39: #{tpu_custom_call.1} parent=35 // pred_region
            // Predicated region
            $region41: #{tpu_custom_call.1} parent=39 // pred_check
              _
            $region42: #{tpu_custom_call.1} parent=39 // pred_check_branch
              %447 = sbr.rel (0) target = $region44
            $region43: #{tpu_custom_call.1} parent=39 // pred_region
              // Predicated region
              $region63: #{tpu_custom_call.1} parent=43 // pred_check
                _
              $region64: #{tpu_custom_call.1} parent=43 // pred_check_branch
                %559 = sbr.rel (0) target = $region66
              $region65: #{tpu_custom_call.1} parent=43 // pred_region
                %s560 = sshrl.u32 %s438, 5
                // While loop
                $region67: #{tpu_custom_call.1} parent=65 // loop_pre_header
                  _
                $region68: #{tpu_custom_call.1} parent=65 // loop_header
                  %s562 = sphi 0, %s564
                  %p563 = scmp.ge.s32.totalorder %s562, %s560
                  %s567 = sphi 0, %s636
                  %s568 = sphi %s431, %s639
                  %s569 = sphi %s442, %s640
                $region69: #{tpu_custom_call.1} parent=65 // loop_header_branch
                  %566 = sbr.rel (%p563) target = $region73
                $region70: #{tpu_custom_call.1} parent=65 // loop_body
                  %v570 = vld [vmem:[%s568] sm:$0xff]
                  %571 = vst [vmem:[%s569] sm:$0xff] %v570
                  %v572 = vld [vmem:[%s568 + $0x8] sm:$0xff]
                  %573 = vst [vmem:[%s569 + $0x8] sm:$0xff] %v572
                  %v574 = vld [vmem:[%s568 + $0x10] sm:$0xff]
                  %575 = vst [vmem:[%s569 + $0x10] sm:$0xff] %v574
                  %v576 = vld [vmem:[%s568 + $0x18] sm:$0xff]
                  %577 = vst [vmem:[%s569 + $0x18] sm:$0xff] %v576
                  %v578 = vld [vmem:[%s568 + $0x20] sm:$0xff]
                  %579 = vst [vmem:[%s569 + $0x20] sm:$0xff] %v578
                  %v580 = vld [vmem:[%s568 + $0x28] sm:$0xff]
                  %581 = vst [vmem:[%s569 + $0x28] sm:$0xff] %v580
                  %v582 = vld [vmem:[%s568 + $0x30] sm:$0xff]
                  %583 = vst [vmem:[%s569 + $0x30] sm:$0xff] %v582
                  %v584 = vld [vmem:[%s568 + $0x38] sm:$0xff]
                  %585 = vst [vmem:[%s569 + $0x38] sm:$0xff] %v584
                  %v586 = vld [vmem:[%s568 + $0x40] sm:$0xff]
                  %587 = vst [vmem:[%s569 + $0x40] sm:$0xff] %v586
                  %v588 = vld [vmem:[%s568 + $0x48] sm:$0xff]
                  %589 = vst [vmem:[%s569 + $0x48] sm:$0xff] %v588
                  %v590 = vld [vmem:[%s568 + $0x50] sm:$0xff]
                  %591 = vst [vmem:[%s569 + $0x50] sm:$0xff] %v590
                  %v592 = vld [vmem:[%s568 + $0x58] sm:$0xff]
                  %593 = vst [vmem:[%s569 + $0x58] sm:$0xff] %v592
                  %v594 = vld [vmem:[%s568 + $0x60] sm:$0xff]
                  %595 = vst [vmem:[%s569 + $0x60] sm:$0xff] %v594
                  %v596 = vld [vmem:[%s568 + $0x68] sm:$0xff]
                  %597 = vst [vmem:[%s569 + $0x68] sm:$0xff] %v596
                  %v598 = vld [vmem:[%s568 + $0x70] sm:$0xff]
                  %599 = vst [vmem:[%s569 + $0x70] sm:$0xff] %v598
                  %v600 = vld [vmem:[%s568 + $0x78] sm:$0xff]
                  %601 = vst [vmem:[%s569 + $0x78] sm:$0xff] %v600
                  %v602 = vld [vmem:[%s568 + $0x80] sm:$0xff]
                  %603 = vst [vmem:[%s569 + $0x80] sm:$0xff] %v602
                  %v604 = vld [vmem:[%s568 + $0x88] sm:$0xff]
                  %605 = vst [vmem:[%s569 + $0x88] sm:$0xff] %v604
                  %v606 = vld [vmem:[%s568 + $0x90] sm:$0xff]
                  %607 = vst [vmem:[%s569 + $0x90] sm:$0xff] %v606
                  %v608 = vld [vmem:[%s568 + $0x98] sm:$0xff]
                  %609 = vst [vmem:[%s569 + $0x98] sm:$0xff] %v608
                  %v610 = vld [vmem:[%s568 + $0xa0] sm:$0xff]
                  %611 = vst [vmem:[%s569 + $0xa0] sm:$0xff] %v610
                  %v612 = vld [vmem:[%s568 + $0xa8] sm:$0xff]
                  %613 = vst [vmem:[%s569 + $0xa8] sm:$0xff] %v612
                  %v614 = vld [vmem:[%s568 + $0xb0] sm:$0xff]
                  %615 = vst [vmem:[%s569 + $0xb0] sm:$0xff] %v614
                  %v616 = vld [vmem:[%s568 + $0xb8] sm:$0xff]
                  %617 = vst [vmem:[%s569 + $0xb8] sm:$0xff] %v616
                  %v618 = vld [vmem:[%s568 + $0xc0] sm:$0xff]
                  %619 = vst [vmem:[%s569 + $0xc0] sm:$0xff] %v618
                  %v620 = vld [vmem:[%s568 + $0xc8] sm:$0xff]
                  %621 = vst [vmem:[%s569 + $0xc8] sm:$0xff] %v620
                  %v622 = vld [vmem:[%s568 + $0xd0] sm:$0xff]
                  %623 = vst [vmem:[%s569 + $0xd0] sm:$0xff] %v622
                  %v624 = vld [vmem:[%s568 + $0xd8] sm:$0xff]
                  %625 = vst [vmem:[%s569 + $0xd8] sm:$0xff] %v624
                  %v626 = vld [vmem:[%s568 + $0xe0] sm:$0xff]
                  %627 = vst [vmem:[%s569 + $0xe0] sm:$0xff] %v626
                  %v628 = vld [vmem:[%s568 + $0xe8] sm:$0xff]
                  %629 = vst [vmem:[%s569 + $0xe8] sm:$0xff] %v628
                  %v630 = vld [vmem:[%s568 + $0xf0] sm:$0xff]
                  %631 = vst [vmem:[%s569 + $0xf0] sm:$0xff] %v630
                  %v632 = vld [vmem:[%s568 + $0xf8] sm:$0xff]
                  %633 = vst [vmem:[%s569 + $0xf8] sm:$0xff] %v632
                  %s634 = sadd.s32 1, %s567
                  %p635 = scmp.ge.s32.totalorder %s634, %s560
                  %s636 = scalar_select %p635, 0, %s634
                  %s637 = smul.u32 %s636, 256
                  %s638 = smul.u32 %s636, 256
                  %s639 = scalar_lea.vmem %s431, %s637 [#allocation3]
                  %s640 = scalar_lea.vmem %s442, %s638
                $region71: #{tpu_custom_call.1} parent=65 // loop_footer
                  %s564 = sadd.s32 %s562, 1
                $region72: #{tpu_custom_call.1} parent=65 // loop_footer_branch
                  %561 = sbr.rel target = $region68
                $region73: #{tpu_custom_call.1} parent=65 // loop_exit
                  _
                %s641 = sshrl.u32 %s438, 5
                %s642 = sand.u32 %s438, 31
                %s643 = smul.u32 %s641, 32
                %s644 = smul.u32 8, %s643
                %s645 = scalar_lea.vmem %s431, %s644 [#allocation3]
                %s646 = smul.u32 8, %s643
                %s647 = scalar_lea.vmem %s442, %s646
                // While loop
                $region74: #{tpu_custom_call.1} parent=65 // loop_pre_header
                  _
                $region75: #{tpu_custom_call.1} parent=65 // loop_header
                  %s649 = sphi 0, %s651
                  %p650 = scmp.ge.s32.totalorder %s649, %s642
                  %s654 = sphi 0, %s661
                  %s655 = sphi %s645, %s664
                  %s656 = sphi %s647, %s665
                $region76: #{tpu_custom_call.1} parent=65 // loop_header_branch
                  %653 = sbr.rel (%p650) target = $region80
                $region77: #{tpu_custom_call.1} parent=65 // loop_body
                  %v657 = vld [vmem:[%s655] sm:$0xff]
                  %658 = vst [vmem:[%s656] sm:$0xff] %v657
                  %s659 = sadd.s32 1, %s654
                  %p660 = scmp.ge.s32.totalorder %s659, %s642
                  %s661 = scalar_select %p660, 0, %s659
                  %s662 = smul.u32 %s661, 8
                  %s663 = smul.u32 %s661, 8
                  %s664 = scalar_lea.vmem %s645, %s662 [#allocation3]
                  %s665 = scalar_lea.vmem %s647, %s663
                $region78: #{tpu_custom_call.1} parent=65 // loop_footer
                  %s651 = sadd.s32 %s649, 1
                $region79: #{tpu_custom_call.1} parent=65 // loop_footer_branch
                  %648 = sbr.rel target = $region75
                $region80: #{tpu_custom_call.1} parent=65 // loop_exit
                  _
              $region66: #{tpu_custom_call.1} parent=43 // pred_fallthru
                _
              // Predicated region
              $region81: #{tpu_custom_call.1} parent=43 // pred_check
                _
              $region82: #{tpu_custom_call.1} parent=43 // pred_check_branch
                %667 = sbr.rel target = $region84
              $region83: #{tpu_custom_call.1} parent=43 // pred_region
                _
              $region84: #{tpu_custom_call.1} parent=43 // pred_fallthru
                _
            $region44: #{tpu_custom_call.1} parent=39 // pred_fallthru
              _
            // Predicated region
            $region45: #{tpu_custom_call.1} parent=39 // pred_check
              _
            $region46: #{tpu_custom_call.1} parent=39 // pred_check_branch
              %449 = sbr.rel target = $region48
            $region47: #{tpu_custom_call.1} parent=39 // pred_region
              %s451 = ssub.s32 256, 1
              %s452 = sshrl.u32 %s438, 5
              // While loop
              $region49: #{tpu_custom_call.1} parent=47 // loop_pre_header
                _
              $region50: #{tpu_custom_call.1} parent=47 // loop_header
                %s454 = sphi 0, %s456
                %p455 = scmp.ge.s32.totalorder %s454, %s452
                %s459 = sphi 0, %s528
                %s460 = sphi %s431, %s531
                %s461 = sphi %s442, %s532
              $region51: #{tpu_custom_call.1} parent=47 // loop_header_branch
                %458 = sbr.rel (%p455) target = $region55
              $region52: #{tpu_custom_call.1} parent=47 // loop_body
                %v462 = vld [vmem:[%s460] sm:%s451]
                %463 = vst [vmem:[%s461] sm:%s451] %v462
                %v464 = vld [vmem:[%s460 + $0x8] sm:%s451]
                %465 = vst [vmem:[%s461 + $0x8] sm:%s451] %v464
                %v466 = vld [vmem:[%s460 + $0x10] sm:%s451]
                %467 = vst [vmem:[%s461 + $0x10] sm:%s451] %v466
                %v468 = vld [vmem:[%s460 + $0x18] sm:%s451]
                %469 = vst [vmem:[%s461 + $0x18] sm:%s451] %v468
                %v470 = vld [vmem:[%s460 + $0x20] sm:%s451]
                %471 = vst [vmem:[%s461 + $0x20] sm:%s451] %v470
                %v472 = vld [vmem:[%s460 + $0x28] sm:%s451]
                %473 = vst [vmem:[%s461 + $0x28] sm:%s451] %v472
                %v474 = vld [vmem:[%s460 + $0x30] sm:%s451]
                %475 = vst [vmem:[%s461 + $0x30] sm:%s451] %v474
                %v476 = vld [vmem:[%s460 + $0x38] sm:%s451]
                %477 = vst [vmem:[%s461 + $0x38] sm:%s451] %v476
                %v478 = vld [vmem:[%s460 + $0x40] sm:%s451]
                %479 = vst [vmem:[%s461 + $0x40] sm:%s451] %v478
                %v480 = vld [vmem:[%s460 + $0x48] sm:%s451]
                %481 = vst [vmem:[%s461 + $0x48] sm:%s451] %v480
                %v482 = vld [vmem:[%s460 + $0x50] sm:%s451]
                %483 = vst [vmem:[%s461 + $0x50] sm:%s451] %v482
                %v484 = vld [vmem:[%s460 + $0x58] sm:%s451]
                %485 = vst [vmem:[%s461 + $0x58] sm:%s451] %v484
                %v486 = vld [vmem:[%s460 + $0x60] sm:%s451]
                %487 = vst [vmem:[%s461 + $0x60] sm:%s451] %v486
                %v488 = vld [vmem:[%s460 + $0x68] sm:%s451]
                %489 = vst [vmem:[%s461 + $0x68] sm:%s451] %v488
                %v490 = vld [vmem:[%s460 + $0x70] sm:%s451]
                %491 = vst [vmem:[%s461 + $0x70] sm:%s451] %v490
                %v492 = vld [vmem:[%s460 + $0x78] sm:%s451]
                %493 = vst [vmem:[%s461 + $0x78] sm:%s451] %v492
                %v494 = vld [vmem:[%s460 + $0x80] sm:%s451]
                %495 = vst [vmem:[%s461 + $0x80] sm:%s451] %v494
                %v496 = vld [vmem:[%s460 + $0x88] sm:%s451]
                %497 = vst [vmem:[%s461 + $0x88] sm:%s451] %v496
                %v498 = vld [vmem:[%s460 + $0x90] sm:%s451]
                %499 = vst [vmem:[%s461 + $0x90] sm:%s451] %v498
                %v500 = vld [vmem:[%s460 + $0x98] sm:%s451]
                %501 = vst [vmem:[%s461 + $0x98] sm:%s451] %v500
                %v502 = vld [vmem:[%s460 + $0xa0] sm:%s451]
                %503 = vst [vmem:[%s461 + $0xa0] sm:%s451] %v502
                %v504 = vld [vmem:[%s460 + $0xa8] sm:%s451]
                %505 = vst [vmem:[%s461 + $0xa8] sm:%s451] %v504
                %v506 = vld [vmem:[%s460 + $0xb0] sm:%s451]
                %507 = vst [vmem:[%s461 + $0xb0] sm:%s451] %v506
                %v508 = vld [vmem:[%s460 + $0xb8] sm:%s451]
                %509 = vst [vmem:[%s461 + $0xb8] sm:%s451] %v508
                %v510 = vld [vmem:[%s460 + $0xc0] sm:%s451]
                %511 = vst [vmem:[%s461 + $0xc0] sm:%s451] %v510
                %v512 = vld [vmem:[%s460 + $0xc8] sm:%s451]
                %513 = vst [vmem:[%s461 + $0xc8] sm:%s451] %v512
                %v514 = vld [vmem:[%s460 + $0xd0] sm:%s451]
                %515 = vst [vmem:[%s461 + $0xd0] sm:%s451] %v514
                %v516 = vld [vmem:[%s460 + $0xd8] sm:%s451]
                %517 = vst [vmem:[%s461 + $0xd8] sm:%s451] %v516
                %v518 = vld [vmem:[%s460 + $0xe0] sm:%s451]
                %519 = vst [vmem:[%s461 + $0xe0] sm:%s451] %v518
                %v520 = vld [vmem:[%s460 + $0xe8] sm:%s451]
                %521 = vst [vmem:[%s461 + $0xe8] sm:%s451] %v520
                %v522 = vld [vmem:[%s460 + $0xf0] sm:%s451]
                %523 = vst [vmem:[%s461 + $0xf0] sm:%s451] %v522
                %v524 = vld [vmem:[%s460 + $0xf8] sm:%s451]
                %525 = vst [vmem:[%s461 + $0xf8] sm:%s451] %v524
                %s526 = sadd.s32 1, %s459
                %p527 = scmp.ge.s32.totalorder %s526, %s452
                %s528 = scalar_select %p527, 0, %s526
                %s529 = smul.u32 %s528, 256
                %s530 = smul.u32 %s528, 256
                %s531 = scalar_lea.vmem %s431, %s529 [#allocation3]
                %s532 = scalar_lea.vmem %s442, %s530
              $region53: #{tpu_custom_call.1} parent=47 // loop_footer
                %s456 = sadd.s32 %s454, 1
              $region54: #{tpu_custom_call.1} parent=47 // loop_footer_branch
                %453 = sbr.rel target = $region50
              $region55: #{tpu_custom_call.1} parent=47 // loop_exit
                _
              %s533 = sshrl.u32 %s438, 5
              %s534 = sand.u32 %s438, 31
              %s535 = smul.u32 %s533, 32
              %s536 = smul.u32 8, %s535
              %s537 = scalar_lea.vmem %s431, %s536 [#allocation3]
              %s538 = smul.u32 8, %s535
              %s539 = scalar_lea.vmem %s442, %s538
              // While loop
              $region56: #{tpu_custom_call.1} parent=47 // loop_pre_header
                _
              $region57: #{tpu_custom_call.1} parent=47 // loop_header
                %s541 = sphi 0, %s543
                %p542 = scmp.ge.s32.totalorder %s541, %s534
                %s546 = sphi 0, %s553
                %s547 = sphi %s537, %s556
                %s548 = sphi %s539, %s557
              $region58: #{tpu_custom_call.1} parent=47 // loop_header_branch
                %545 = sbr.rel (%p542) target = $region62
              $region59: #{tpu_custom_call.1} parent=47 // loop_body
                %v549 = vld [vmem:[%s547] sm:%s451]
                %550 = vst [vmem:[%s548] sm:%s451] %v549
                %s551 = sadd.s32 1, %s546
                %p552 = scmp.ge.s32.totalorder %s551, %s534
                %s553 = scalar_select %p552, 0, %s551
                %s554 = smul.u32 %s553, 8
                %s555 = smul.u32 %s553, 8
                %s556 = scalar_lea.vmem %s537, %s554 [#allocation3]
                %s557 = scalar_lea.vmem %s539, %s555
              $region60: #{tpu_custom_call.1} parent=47 // loop_footer
                %s543 = sadd.s32 %s541, 1
              $region61: #{tpu_custom_call.1} parent=47 // loop_footer_branch
                %540 = sbr.rel target = $region57
              $region62: #{tpu_custom_call.1} parent=47 // loop_exit
                _
            $region48: #{tpu_custom_call.1} parent=39 // pred_fallthru
              _
          $region40: #{tpu_custom_call.1} parent=35 // pred_fallthru
            _
          %668 = vnop
        $region36: #{tpu_custom_call.1} parent=31 // pred_fallthru
          _
      $region32: #{tpu_custom_call.1} parent=5 // pred_fallthru
        _
      %p669 = scmp.le.s32.totalorder 2, %s10
      // Predicated region
      $region85: #{tpu_custom_call.1} parent=5 // pred_check
        %p670 = pneg %p669
      $region86: #{tpu_custom_call.1} parent=5 // pred_check_branch
        %672 = sbr.rel (%p670) target = $region88
      $region87: #{tpu_custom_call.1} parent=5 // pred_region
        %s673 = ssub.s32 %s10, 2
        // Predicated region
        $region89: #{tpu_custom_call.1} parent=87 // pred_check
          %p674 = pneg %p107
        $region90: #{tpu_custom_call.1} parent=87 // pred_check_branch
          %676 = sbr.rel (%p674) target = $region92
        $region91: #{tpu_custom_call.1} parent=87 // pred_region
          %s677 = sand.u32 %s92, 1
          %s678 = sand.u32 %s92, 1
          %s679 = smul.addr %s678, 256
          %s680 = scalar_lea.vmem [#allocation3], %s679
        $region92: #{tpu_custom_call.1} parent=87 // pred_fallthru
          _
      $region88: #{tpu_custom_call.1} parent=5 // pred_fallthru
        _
    $region6: #{tpu_custom_call.1} parent=1 // loop_footer
      %s14 = sadd.s32 1, %s10
    $region7: #{tpu_custom_call.1} parent=1 // loop_footer_branch
      %9 = sbr.rel target = $region3
    $region8: #{tpu_custom_call.1} parent=1 // loop_exit
      _

</llo_original>
